<compile_context>
chip_gen: v7x
topology: tpu7x:2x2x1
jax: 0.10.0
libtpu: 0.0.40
codegen_flags: <defaults>
</compile_context>

<pallas_src>
import functools

import jax
import jax.numpy as jnp
from jax.experimental import pallas as pl
from jax.experimental.pallas import tpu as pltpu


def _round_up(x, m):
    return (x + m - 1) // m * m


def _cdiv(a, b):
    return (a + b - 1) // b


def _vmem_capacity_bytes():
    """Best-effort VMEM capacity query; falls back to the smallest (v7x per-core) value."""
    try:
        info = pltpu.get_tpu_info()
        cap = getattr(info, "vmem_capacity_bytes", None)
        if cap:
            return int(cap)
    except Exception:
        pass
    return 64 * 1024 * 1024


def _conv2d_kernel(x_ref, halo_ref, w_ref, b_ref, o_ref, *, kh, kw, tile_h, halo, w_out):
    """One row-tile of the cross-correlation.

    x_ref    : (tile_h, w_in)  VMEM -- this tile's input rows (native dtype)
    halo_ref : (halo,   w_in)  VMEM -- first rows of the next tile (window overlap)
    w_ref    : (kh*kw,)        SMEM -- flattened kernel taps (f32)
    b_ref    : (1,)            SMEM -- bias (f32)
    o_ref    : (tile_h, w_out) VMEM -- output tile (exact width; Pallas masks ragged edges)
    """
    taps = [w_ref[t] for t in range(kh * kw)]     # hoist SMEM scalar reads
    bias = b_ref[0]

    def accumulate(col_fn, rows):
        # Lane (column) shift hoisted: one shifted view per dj, only sublane row slices inside.
        acc = jnp.full((rows, w_out), bias, jnp.float32)   # bias-seeded: no zeros + trailing add
        for dj in range(kw):
            col = col_fn(dj)                                # (>= rows + kh - 1, w_out) f32
            for di in range(kh):
                acc = acc + col[di:di + rows, :] * taps[di * kw + dj]
        return acc

    bulk_h = tile_h - halo

    # Bulk: output rows [0, bulk_h) only need this tile's own input rows -> read x_ref directly.
    if bulk_h > 0:
        bulk = accumulate(lambda dj: x_ref[:, dj:dj + w_out].astype(jnp.float32), bulk_h)
        o_ref[pl.ds(0, bulk_h), :] = bulk.astype(o_ref.dtype)

    # Tail: last `halo` output rows straddle the tile boundary -> stitch a tiny (2*halo, w) slab.
    tail_slab = jnp.concatenate(
        [x_ref[pl.ds(bulk_h, halo), :].astype(jnp.float32),
         halo_ref[...].astype(jnp.float32)],
        axis=0)
    tail = accumulate(lambda dj: tail_slab[:, dj:dj + w_out], halo)
    o_ref[pl.ds(bulk_h, halo), :] = tail.astype(o_ref.dtype)


def conv2d_pallas(x, weight, bias, *, tile_h=None):
    """corr2d(x, weight) + bias -- semantics identical to the PyTorch Conv2D module."""
    assert x.ndim == 2 and weight.ndim == 2
    h, w = x.shape
    kh, kw = weight.shape
    ho, wo = h - kh + 1, w - kw + 1
    assert ho > 0 and wo > 0, "kernel larger than input"

    halo = _round_up(max(kh - 1, 1), 8)           # sublane-aligned row overlap between tiles
    itemsize = jnp.dtype(x.dtype).itemsize

    # Generation-aware budgets: big slabs on 128-MiB-VMEM parts (v5e/v6e), smaller on v7x.
    vmem_cap = _vmem_capacity_bytes()
    if vmem_cap >= 96 * 1024 * 1024:
        target_slab, vmem_limit = 8 * 1024 * 1024, 96 * 1024 * 1024
    else:
        target_slab, vmem_limit = 4 * 1024 * 1024, 48 * 1024 * 1024

    if tile_h is None:
        row_bytes = max(w * itemsize, 1)
        budget_rows = max(halo, (target_slab // row_bytes) // halo * halo)
        # Aim for >= 4 grid steps so v7x's two TensorCores both get work.
        multicore_rows = max(halo, _round_up(_cdiv(ho, 4), halo))
        tile_h = min(budget_rows, multicore_rows, _round_up(ho, halo))
    tile_h = max(halo, _round_up(tile_h, halo))

    n_tiles = _cdiv(ho, tile_h)
    halo_blocks_per_tile = tile_h // halo
    max_halo_block = (h - 1) // halo              # clamp: never issue a fully-OOB halo DMA

    w_flat = weight.reshape(-1).astype(jnp.float32)
    b_flat = bias.reshape(-1).astype(jnp.float32)

    kernel = functools.partial(
        _conv2d_kernel, kh=kh, kw=kw, tile_h=tile_h, halo=halo, w_out=wo)

    cost = pl.CostEstimate(
        flops=2 * kh * kw * ho * wo,
        transcendentals=0,
        bytes_accessed=h * w * itemsize + ho * wo * itemsize + (kh * kw + 1) * 4)

    def halo_index_map(i):
        return (jnp.minimum((i + 1) * halo_blocks_per_tile, max_halo_block), 0)

    out = pl.pallas_call(
        kernel,
        out_shape=jax.ShapeDtypeStruct((ho, wo), x.dtype),
        grid_spec=pltpu.PrefetchScalarGridSpec(
            num_scalar_prefetch=0,
            grid=(n_tiles,),
            in_specs=[
                # This tile's rows (native dtype, unpadded; ragged edge handled by Pallas).
                pl.BlockSpec((tile_h, w), lambda i: (i, 0)),
                # Halo: first `halo` rows of the next tile (same array, clamped second view).
                pl.BlockSpec((halo, w), halo_index_map),
                # Kernel taps and bias as cheap SMEM scalars.
                pl.BlockSpec(memory_space=pltpu.MemorySpace.SMEM),
                pl.BlockSpec(memory_space=pltpu.MemorySpace.SMEM),
            ],
            out_specs=pl.BlockSpec((tile_h, wo), lambda i: (i, 0)),
        ),
        compiler_params=pltpu.CompilerParams(
            dimension_semantics=("parallel",),    # megacore sharding on v7x
            vmem_limit_bytes=vmem_limit,
        ),
        cost_estimate=cost,
    )(x, x, w_flat, b_flat)

    return out


def conv2d_reference(x, weight, bias):
    """Pure-JAX reference mirroring the PyTorch corr2d loop."""
    h, w = x.shape
    kh, kw = weight.shape
    ho, wo = h - kh + 1, w - kw + 1
    acc = jnp.zeros((ho, wo), jnp.float32)
    for di in range(kh):
        for dj in range(kw):
            acc = acc + x[di:di + ho, dj:dj + wo].astype(jnp.float32) * weight[di, dj]
    return (acc + bias[0]).astype(x.dtype)


if __name__ == "__main__":
    key = jax.random.PRNGKey(0)
    kx, kw_ = jax.random.split(key)

    # Small shapes consistent with the module's forward: X is (H, W), kernel_size=(3, 3).
    H, W = 16, 16
    KH, KW = 3, 3

    x = jax.random.normal(kx, (H, W), dtype=jnp.float32)
    weight = jax.random.uniform(kw_, (KH, KW), dtype=jnp.float32)  # matches torch.rand init
    bias = jnp.zeros((1,), dtype=jnp.float32)

    out = jax.block_until_ready(conv2d_pallas(x, weight, bias))
    ref = conv2d_reference(x, weight, bias)
    assert out.shape == (H - KH + 1, W - KW + 1)
    assert jnp.allclose(out, ref, atol=1e-5, rtol=1e-5)

    # Multi-tile + halo + clamped-last-halo path (several row tiles in the grid).
    H2, W2 = 40, 48
    x2 = jax.random.normal(jax.random.PRNGKey(1), (H2, W2), dtype=jnp.float32)
    out2 = jax.block_until_ready(conv2d_pallas(x2, weight, bias, tile_h=16))
    ref2 = conv2d_reference(x2, weight, bias)
    assert out2.shape == (H2 - KH + 1, W2 - KW + 1)
    assert jnp.allclose(out2, ref2, atol=1e-5, rtol=1e-5)

    # Ragged rows and narrow odd width with default (auto) tiling.
    H3, W3 = 21, 19
    x3 = jax.random.normal(jax.random.PRNGKey(2), (H3, W3), dtype=jnp.float32)
    out3 = jax.block_until_ready(conv2d_pallas(x3, weight, bias))
    ref3 = conv2d_reference(x3, weight, bias)
    assert out3.shape == (H3 - KH + 1, W3 - KW + 1)
    assert jnp.allclose(out3, ref3, atol=1e-5, rtol=1e-5)

    print("KERNEL_OK")
</pallas_src>

<mosaic_0001>
module attributes {stable_mosaic.version = 11 : i64} {
  func.func @_conv2d_kernel(%arg0: i32, %arg1: memref<8x16xf32, #tpu.memory_space<vmem>>, %arg2: memref<8x16xf32, #tpu.memory_space<vmem>>, %arg3: memref<9xf32, #tpu.memory_space<smem>>, %arg4: memref<1xf32, #tpu.memory_space<smem>>, %arg5: memref<8x14xf32, #tpu.memory_space<vmem>>) attributes {dimension_semantics = [#tpu.dimension_semantics<parallel>], iteration_bounds = array<i64: 2>, scalar_prefetch = 0 : i64, scratch_operands = 0 : i64, tpu.core_type = #tpu.core_type<tc>, window_params = [{transform_indices = @transform_0, window_bounds = array<i64: 8, 16>}, {transform_indices = @transform_1, window_bounds = array<i64: 8, 16>}, {transform_indices = @transform_2, window_bounds = array<i64: 9>}, {transform_indices = @transform_3, window_bounds = array<i64: 1>}, {transform_indices = @transform_4, window_bounds = array<i64: 8, 14>}]} {
    %c0 = arith.constant 0 : index
    %0 = memref.load %arg3[%c0] : memref<9xf32, #tpu.memory_space<smem>>
    %c1 = arith.constant 1 : index
    %1 = memref.load %arg3[%c1] : memref<9xf32, #tpu.memory_space<smem>>
    %c2 = arith.constant 2 : index
    %2 = memref.load %arg3[%c2] : memref<9xf32, #tpu.memory_space<smem>>
    %c3 = arith.constant 3 : index
    %3 = memref.load %arg3[%c3] : memref<9xf32, #tpu.memory_space<smem>>
    %c4 = arith.constant 4 : index
    %4 = memref.load %arg3[%c4] : memref<9xf32, #tpu.memory_space<smem>>
    %c5 = arith.constant 5 : index
    %5 = memref.load %arg3[%c5] : memref<9xf32, #tpu.memory_space<smem>>
    %c6 = arith.constant 6 : index
    %6 = memref.load %arg3[%c6] : memref<9xf32, #tpu.memory_space<smem>>
    %c7 = arith.constant 7 : index
    %7 = memref.load %arg3[%c7] : memref<9xf32, #tpu.memory_space<smem>>
    %c8 = arith.constant 8 : index
    %8 = memref.load %arg3[%c8] : memref<9xf32, #tpu.memory_space<smem>>
    %c0_0 = arith.constant 0 : index
    %9 = memref.load %arg4[%c0_0] : memref<1xf32, #tpu.memory_space<smem>>
    %c0_1 = arith.constant 0 : index
    %c0_2 = arith.constant 0 : index
    %10 = vector.load %arg1[%c0_1, %c0_2] : memref<8x16xf32, #tpu.memory_space<vmem>>, vector<8x16xf32>
    %c0_3 = arith.constant 0 : index
    %c0_4 = arith.constant 0 : index
    %11 = vector.load %arg2[%c0_3, %c0_4] : memref<8x16xf32, #tpu.memory_space<vmem>>, vector<8x16xf32>
    %12 = tpu.concatenate %10, %11 in 0 : vector<8x16xf32>, vector<8x16xf32> -> vector<16x16xf32>
    %13 = vector.broadcast %9 : f32 to vector<8x14xf32>
    %14 = vector.extract_strided_slice %12 {offsets = [0, 0], sizes = [16, 14], strides = [1, 1]} : vector<16x16xf32> to vector<16x14xf32>
    %15 = vector.extract_strided_slice %14 {offsets = [0, 0], sizes = [8, 14], strides = [1, 1]} : vector<16x14xf32> to vector<8x14xf32>
    %16 = vector.broadcast %0 : f32 to vector<8x14xf32>
    %17 = arith.mulf %15, %16 : vector<8x14xf32>
    %18 = arith.addf %13, %17 : vector<8x14xf32>
    %19 = vector.extract_strided_slice %14 {offsets = [1, 0], sizes = [8, 14], strides = [1, 1]} : vector<16x14xf32> to vector<8x14xf32>
    %20 = vector.broadcast %3 : f32 to vector<8x14xf32>
    %21 = arith.mulf %19, %20 : vector<8x14xf32>
    %22 = arith.addf %18, %21 : vector<8x14xf32>
    %23 = vector.extract_strided_slice %14 {offsets = [2, 0], sizes = [8, 14], strides = [1, 1]} : vector<16x14xf32> to vector<8x14xf32>
    %24 = vector.broadcast %6 : f32 to vector<8x14xf32>
    %25 = arith.mulf %23, %24 : vector<8x14xf32>
    %26 = arith.addf %22, %25 : vector<8x14xf32>
    %27 = vector.extract_strided_slice %12 {offsets = [0, 1], sizes = [16, 14], strides = [1, 1]} : vector<16x16xf32> to vector<16x14xf32>
    %28 = vector.extract_strided_slice %27 {offsets = [0, 0], sizes = [8, 14], strides = [1, 1]} : vector<16x14xf32> to vector<8x14xf32>
    %29 = vector.broadcast %1 : f32 to vector<8x14xf32>
    %30 = arith.mulf %28, %29 : vector<8x14xf32>
    %31 = arith.addf %26, %30 : vector<8x14xf32>
    %32 = vector.extract_strided_slice %27 {offsets = [1, 0], sizes = [8, 14], strides = [1, 1]} : vector<16x14xf32> to vector<8x14xf32>
    %33 = vector.broadcast %4 : f32 to vector<8x14xf32>
    %34 = arith.mulf %32, %33 : vector<8x14xf32>
    %35 = arith.addf %31, %34 : vector<8x14xf32>
    %36 = vector.extract_strided_slice %27 {offsets = [2, 0], sizes = [8, 14], strides = [1, 1]} : vector<16x14xf32> to vector<8x14xf32>
    %37 = vector.broadcast %7 : f32 to vector<8x14xf32>
    %38 = arith.mulf %36, %37 : vector<8x14xf32>
    %39 = arith.addf %35, %38 : vector<8x14xf32>
    %40 = vector.extract_strided_slice %12 {offsets = [0, 2], sizes = [16, 14], strides = [1, 1]} : vector<16x16xf32> to vector<16x14xf32>
    %41 = vector.extract_strided_slice %40 {offsets = [0, 0], sizes = [8, 14], strides = [1, 1]} : vector<16x14xf32> to vector<8x14xf32>
    %42 = vector.broadcast %2 : f32 to vector<8x14xf32>
    %43 = arith.mulf %41, %42 : vector<8x14xf32>
    %44 = arith.addf %39, %43 : vector<8x14xf32>
    %45 = vector.extract_strided_slice %40 {offsets = [1, 0], sizes = [8, 14], strides = [1, 1]} : vector<16x14xf32> to vector<8x14xf32>
    %46 = vector.broadcast %5 : f32 to vector<8x14xf32>
    %47 = arith.mulf %45, %46 : vector<8x14xf32>
    %48 = arith.addf %44, %47 : vector<8x14xf32>
    %49 = vector.extract_strided_slice %40 {offsets = [2, 0], sizes = [8, 14], strides = [1, 1]} : vector<16x14xf32> to vector<8x14xf32>
    %50 = vector.broadcast %8 : f32 to vector<8x14xf32>
    %51 = arith.mulf %49, %50 : vector<8x14xf32>
    %52 = arith.addf %48, %51 : vector<8x14xf32>
    %c0_5 = arith.constant 0 : index
    %c0_6 = arith.constant 0 : index
    %53 = vector.load %arg5[%c0_5, %c0_6] : memref<8x14xf32, #tpu.memory_space<vmem>>, vector<8x14xf32>
    tpu.vector_store %arg5[%c0_5, %c0_6], %52 {strides = array<i32>} : memref<8x14xf32, #tpu.memory_space<vmem>>, vector<8x14xf32>,
    return
  }
  func.func @transform_0(%arg0: i32) -> (i32, i32) {
    %c0_i32 = arith.constant 0 : i32
    %c0_i32_0 = arith.constant 0 : i32
    return %arg0, %c0_i32 : i32, i32
  }
  func.func @transform_1(%arg0: i32) -> (i32, i32) {
    %c1_i32 = arith.constant 1 : i32
    %0 = arith.addi %arg0, %c1_i32 : i32
    %c1_i32_0 = arith.constant 1 : i32
    %1 = arith.muli %0, %c1_i32_0 : i32
    %c1_i32_1 = arith.constant 1 : i32
    %2 = arith.minsi %1, %c1_i32_1 : i32
    %c0_i32 = arith.constant 0 : i32
    %c0_i32_2 = arith.constant 0 : i32
    return %2, %c0_i32 : i32, i32
  }
  func.func @transform_2(%arg0: i32) -> i32 {
    %c0_i32 = arith.constant 0 : i32
    %c0_i32_0 = arith.constant 0 : i32
    return %c0_i32 : i32
  }
  func.func @transform_3(%arg0: i32) -> i32 {
    %c0_i32 = arith.constant 0 : i32
    %c0_i32_0 = arith.constant 0 : i32
    return %c0_i32 : i32
  }
  func.func @transform_4(%arg0: i32) -> (i32, i32) {
    %c0_i32 = arith.constant 0 : i32
    %c0_i32_0 = arith.constant 0 : i32
    return %arg0, %c0_i32 : i32, i32
  }
}

</mosaic_0001>

<llo_original>
// kernel: tpu_custom_call.1
$region0: #{tpu_custom_call.1}
  #allocation0 [shape = 'u32[]', space=smem, size = 0x4, offset = 0x4, fixed_abs, tag = 'smem constant byte address 0x4 - core index']
  #allocation1 [shape = 'u32[144,128]{1,0:T(1,128)}', space=vmem, size = 0x12000, scoped, tag = 'internal scratch']
  #allocation2 [shape = 'f32[1]{0:T(128)S(6)}', space=smem, size = 0x200, scoped, tag = 'scoped memory for tpu_custom_call.1']
  %s0 = inlined_call_operand.hbm [shape: f32[16,16], index: 0, kind: input, shape index: {}]
  %s1 = inlined_call_operand.hbm [shape: f32[16,16], index: 1, kind: input, shape index: {}]
  %s2 = inlined_call_operand.vmem [shape: f32[9], index: 2, kind: input, shape index: {}]
  %s3 = inlined_call_operand.<no memory space> [shape: f32[1], index: 3, kind: input, shape index: {}]
  %s4 = inlined_call_operand.hbm [shape: f32[14,14], index: 4, kind: output, shape index: {}]
  %s5 = sld [smem:[#allocation0]]
  $region61: #{tpu_custom_call.1} parent=0
    _
  %s7 = ssub.s32 1, %s5
  %s8 = scalar_select 0, %s7, %s5
  %9 = sst [smem:[#allocation2]] %s3
  $region1: #{tpu_custom_call.1} parent=0
    #allocation3 [shape = 'u8[8192]{0}', space=vmem, size = 0x2000, scoped, tag = 'input window, operand 0']
    #allocation4 [shape = 's32[2]{0}', space=sflag, size = 0x8, scoped, tag = 'scoped memory for tpu_custom_call.1']
    #allocation5 [shape = 's32[2]{0}', space=sflag, size = 0x8, scoped, tag = 'scoped memory for tpu_custom_call.1']
    #allocation6 [shape = 's32[2]{0}', space=sflag, size = 0x8, scoped, tag = 'scoped memory for tpu_custom_call.1']
    #allocation7 [shape = 'u8[8192]{0}', space=vmem, size = 0x2000, scoped, tag = 'input window, operand 1']
    #allocation8 [shape = 's32[2]{0}', space=sflag, size = 0x8, scoped, tag = 'scoped memory for tpu_custom_call.1']
    #allocation9 [shape = 'u8[512]{0}', space=smem, size = 0x200, scoped, tag = 'input window, operand 2, single buffered']
    #allocation10 [shape = 'u8[8192]{0}', space=vmem, size = 0x2000, scoped, tag = 'output window, operand 0']
    %10 = vsyncpa [#allocation4], 0
    %s11 = scalar_lea.sflag [#allocation4], 1
    %12 = vsyncpa %s11, 0
    %13 = vsyncpa [#allocation8], 0
    %s14 = scalar_lea.sflag [#allocation8], 1
    %15 = vsyncpa %s14, 0
    %16 = vsyncpa [#allocation6], 0
    %17 = vsyncpa [#allocation5], 0
    %s18 = scalar_lea.sflag [#allocation5], 1
    %19 = vsyncpa %s18, 0
    loop: start=0, step=1, limit=4
    $region2: #{tpu_custom_call.1} parent=1 // loop_pre_header
      _
    $region3: #{tpu_custom_call.1} parent=1 // loop_header
      %s21 = sphi 0, %s25
      %p22 = scmp.ge.s32.totalorder %s21, 4
      %s31 = sphi 0, %s33
      %s34 = sphi 0, %s31
      %s35 = sphi 0, %s34
      %s51 = sphi 0, %s35
      %s63 = sphi 0, %s65
      %s66 = sphi 0, %s63
      %s67 = sphi 0, %s66
      %s83 = sphi 0, %s67
      %s87 = sphi 0, %s87
      %s89 = sphi 0, %s87
      %s90 = sphi 0, %s89
      %s104 = sphi 0, %s90
      %s108 = sphi 0, %s108
      %s110 = sphi 0, %s108
      %s111 = sphi 0, %s110
      %s125 = sphi 0, %s111
      %s131 = sphi 0, %s133
      %s134 = sphi 0, %s131
      %s135 = sphi 0, %s134
      %s151 = sphi 0, %s135
    $region4: #{tpu_custom_call.1} parent=1 // loop_header_branch
      %24 = sbr.rel (%p22) target = $region8
    $region5: #{tpu_custom_call.1} parent=1 // loop_body
      %s26 = ssub.s32 %s21, 1
      %s27 = ssub.s32 %s21, 2
      %s28 = sadd.s32 %s21, 1
      %s29 = ssub.s32 %s21, %s28
      %p30 = scmp.eq.s32.totalorder %s29, 0
      %s32 = sadd.s32 %s31, 1
      %s33 = scalar_select %p30, %s31, %s32
      %p36 = pneg %p30
      %p37 = scmp.eq.s32.totalorder %s21, 1
      %p38 = por %p36, %p37
      %p39 = scmp.ne.s32.totalorder %s31, %s34
      %p40 = scmp.eq.s32.totalorder %s21, 0
      %p41 = por %p39, %p40
      %p42 = scmp.ne.s32.totalorder %s31, %s34
      %p43 = scmp.eq.s32.totalorder %s26, 1
      %p44 = por %p42, %p43
      %p45 = scmp.ne.s32.totalorder %s34, %s35
      %p46 = scmp.eq.s32.totalorder %s26, 0
      %p47 = por %p45, %p46
      %p48 = scmp.ne.s32.totalorder %s34, %s35
      %p49 = scmp.eq.s32.totalorder %s27, 1
      %p50 = por %p48, %p49
      %p52 = scmp.ne.s32.totalorder %s35, %s51
      %p53 = scmp.eq.s32.totalorder %s27, 0
      %p54 = por %p52, %p53
      %s55 = sadd.s32 %s21, 1
      %p56 = scmp.lt.s32.totalorder %s55, 1
      %s57 = scalar_select %p56, %s55, 1
      %s58 = sadd.s32 %s28, 1
      %p59 = scmp.lt.s32.totalorder %s58, 1
      %s60 = scalar_select %p59, %s58, 1
      %s61 = ssub.s32 %s57, %s60
      %p62 = scmp.eq.s32.totalorder %s61, 0
      %s64 = sadd.s32 %s63, 1
      %s65 = scalar_select %p62, %s63, %s64
      %p68 = pneg %p62
      %p69 = scmp.eq.s32.totalorder %s21, 1
      %p70 = por %p68, %p69
      %p71 = scmp.ne.s32.totalorder %s63, %s66
      %p72 = scmp.eq.s32.totalorder %s21, 0
      %p73 = por %p71, %p72
      %p74 = scmp.ne.s32.totalorder %s63, %s66
      %p75 = scmp.eq.s32.totalorder %s26, 1
      %p76 = por %p74, %p75
      %p77 = scmp.ne.s32.totalorder %s66, %s67
      %p78 = scmp.eq.s32.totalorder %s26, 0
      %p79 = por %p77, %p78
      %p80 = scmp.ne.s32.totalorder %s66, %s67
      %p81 = scmp.eq.s32.totalorder %s27, 1
      %p82 = por %p80, %p81
      %p84 = scmp.ne.s32.totalorder %s67, %s83
      %p85 = scmp.eq.s32.totalorder %s27, 0
      %p86 = por %p84, %p85
      %s88 = sadd.s32 %s87, 1
      %p91 = scmp.eq.s32.totalorder %s21, 1
      %p92 = scmp.ne.s32.totalorder %s87, %s89
      %p93 = scmp.eq.s32.totalorder %s21, 0
      %p94 = por %p92, %p93
      %p95 = scmp.ne.s32.totalorder %s87, %s89
      %p96 = scmp.eq.s32.totalorder %s26, 1
      %p97 = por %p95, %p96
      %p98 = scmp.ne.s32.totalorder %s89, %s90
      %p99 = scmp.eq.s32.totalorder %s26, 0
      %p100 = por %p98, %p99
      %p101 = scmp.ne.s32.totalorder %s89, %s90
      %p102 = scmp.eq.s32.totalorder %s27, 1
      %p103 = por %p101, %p102
      %p105 = scmp.ne.s32.totalorder %s90, %s104
      %p106 = scmp.eq.s32.totalorder %s27, 0
      %p107 = por %p105, %p106
      %s109 = sadd.s32 %s108, 1
      %p112 = scmp.eq.s32.totalorder %s21, 1
      %p113 = scmp.ne.s32.totalorder %s108, %s110
      %p114 = scmp.eq.s32.totalorder %s21, 0
      %p115 = por %p113, %p114
      %p116 = scmp.ne.s32.totalorder %s108, %s110
      %p117 = scmp.eq.s32.totalorder %s26, 1
      %p118 = por %p116, %p117
      %p119 = scmp.ne.s32.totalorder %s110, %s111
      %p120 = scmp.eq.s32.totalorder %s26, 0
      %p121 = por %p119, %p120
      %p122 = scmp.ne.s32.totalorder %s110, %s111
      %p123 = scmp.eq.s32.totalorder %s27, 1
      %p124 = por %p122, %p123
      %p126 = scmp.ne.s32.totalorder %s111, %s125
      %p127 = scmp.eq.s32.totalorder %s27, 0
      %p128 = por %p126, %p127
      %s129 = ssub.s32 %s21, %s28
      %p130 = scmp.eq.s32.totalorder %s129, 0
      %s132 = sadd.s32 %s131, 1
      %s133 = scalar_select %p130, %s131, %s132
      %p136 = pneg %p130
      %p137 = scmp.eq.s32.totalorder %s21, 1
      %p138 = por %p136, %p137
      %p139 = scmp.ne.s32.totalorder %s131, %s134
      %p140 = scmp.eq.s32.totalorder %s21, 0
      %p141 = por %p139, %p140
      %p142 = scmp.ne.s32.totalorder %s131, %s134
      %p143 = scmp.eq.s32.totalorder %s26, 1
      %p144 = por %p142, %p143
      %p145 = scmp.ne.s32.totalorder %s134, %s135
      %p146 = scmp.eq.s32.totalorder %s26, 0
      %p147 = por %p145, %p146
      %p148 = scmp.ne.s32.totalorder %s134, %s135
      %p149 = scmp.eq.s32.totalorder %s27, 1
      %p150 = por %p148, %p149
      %p152 = scmp.ne.s32.totalorder %s135, %s151
      %p153 = scmp.eq.s32.totalorder %s27, 0
      %p154 = por %p152, %p153
      %p155 = scmp.le.s32.totalorder 1, %s21
      %p156 = scmp.lt.s32.totalorder %s21, 3
      %p157 = pnand %p155, %p156
      %p158 = pneg %p157
      // Predicated region
      $region9: #{tpu_custom_call.1} parent=5 // pred_check
        _
      $region10: #{tpu_custom_call.1} parent=5 // pred_check_branch
        %160 = sbr.rel (%p157) target = $region12
      $region11: #{tpu_custom_call.1} parent=5 // pred_region
        %s161 = ssub.s32 %s21, 1
        // Predicated region
        $region13: #{tpu_custom_call.1} parent=11 // pred_check
          %p162 = pneg %p100
        $region14: #{tpu_custom_call.1} parent=11 // pred_check_branch
          %164 = sbr.rel (%p162) target = $region16
        $region15: #{tpu_custom_call.1} parent=11 // pred_region
          %s166 = ssub.s32 16, 16
          %167 = vsyncadd [#allocation6], %s166
          %s169 = sshll.u32 %s2, 4
          %s170 = int_to_ptr.vmem [resolvable:$true] %s169
          %172 = dma.vmem_to_smem %s170, 16, [#allocation9], [#allocation6]
        $region16: #{tpu_custom_call.1} parent=11 // pred_fallthru
          _
        // Predicated region
        $region17: #{tpu_custom_call.1} parent=11 // pred_check
          %p173 = pneg %p121
        $region18: #{tpu_custom_call.1} parent=11 // pred_check_branch
          %175 = sbr.rel (%p173) target = $region20
        $region19: #{tpu_custom_call.1} parent=11 // pred_region
          _
        $region20: #{tpu_custom_call.1} parent=11 // pred_fallthru
          _
      $region12: #{tpu_custom_call.1} parent=5 // pred_fallthru
        _
      %p176 = scmp.lt.s32.totalorder %s21, 2
      // Predicated region
      $region21: #{tpu_custom_call.1} parent=5 // pred_check
        %p177 = pneg %p176
      $region22: #{tpu_custom_call.1} parent=5 // pred_check_branch
        %179 = sbr.rel (%p177) target = $region24
      $region23: #{tpu_custom_call.1} parent=5 // pred_region
        // Predicated region
        $region25: #{tpu_custom_call.1} parent=23 // pred_check
          %p180 = pneg %p41
        $region26: #{tpu_custom_call.1} parent=23 // pred_check_branch
          %182 = sbr.rel (%p180) target = $region28
        $region27: #{tpu_custom_call.1} parent=23 // pred_region
          %s183 = sand.u32 %s31, 1
          %s184 = scalar_lea.sflag [#allocation4], %s183
          %s185 = sand.u32 %s31, 1
          %s186 = smul.addr %s185, 8
          %s187 = scalar_lea.vmem [#allocation3], %s186
          %s189 = ssub.s32 128, 128
          %190 = vsyncadd %s184, %s189
          %s191 = smul.addr %s21, 128
          %s192 = scalar_lea.hbm %s0, %s191
          %s194 = sshll.u32 %s187, 4
          %s195 = int_to_ptr.vmem [resolvable:$true] %s194
          %197 = dma.hbm_to_vmem [thread:$0]  %s192, 128, %s195, %s184
        $region28: #{tpu_custom_call.1} parent=23 // pred_fallthru
          _
        // Predicated region
        $region29: #{tpu_custom_call.1} parent=23 // pred_check
          %p198 = pneg %p73
        $region30: #{tpu_custom_call.1} parent=23 // pred_check_branch
          %200 = sbr.rel (%p198) target = $region32
        $region31: #{tpu_custom_call.1} parent=23 // pred_region
          %s201 = sand.u32 %s63, 1
          %s202 = scalar_lea.sflag [#allocation8], %s201
          %s203 = sand.u32 %s63, 1
          %s204 = smul.addr %s203, 8
          %s205 = scalar_lea.vmem [#allocation7], %s204
          %s206 = sadd.s32 %s21, 1
          %p207 = scmp.lt.s32.totalorder %s206, 1
          %s208 = scalar_select %p207, %s206, 1
          %s210 = ssub.s32 128, 128
          %211 = vsyncadd %s202, %s210
          %s212 = smul.addr %s208, 128
          %s213 = scalar_lea.hbm %s1, %s212
          %s215 = sshll.u32 %s205, 4
          %s216 = int_to_ptr.vmem [resolvable:$true] %s215
          %218 = dma.hbm_to_vmem [thread:$0]  %s213, 128, %s216, %s202
        $region32: #{tpu_custom_call.1} parent=23 // pred_fallthru
          _
      $region24: #{tpu_custom_call.1} parent=5 // pred_fallthru
        _
      %p219 = scmp.le.s32.totalorder 1, %s21
      %p220 = scmp.lt.s32.totalorder %s21, 3
      %p221 = pnand %p219, %p220
      %p222 = pneg %p221
      // Predicated region
      $region33: #{tpu_custom_call.1} parent=5 // pred_check
        _
      $region34: #{tpu_custom_call.1} parent=5 // pred_check_branch
        %224 = sbr.rel (%p221) target = $region36
      $region35: #{tpu_custom_call.1} parent=5 // pred_region
        %s225 = ssub.s32 %s21, 1
        %s226 = sand.u32 %s34, 1
        %s227 = scalar_lea.sflag [#allocation4], %s226
        %s228 = sand.u32 %s34, 1
        %s229 = smul.addr %s228, 8
        %s230 = scalar_lea.vmem [#allocation3], %s229
        // Predicated region
        $region37: #{tpu_custom_call.1} parent=35 // pred_check
          %p231 = pneg %p47
        $region38: #{tpu_custom_call.1} parent=35 // pred_check_branch
          %233 = sbr.rel (%p231) target = $region40
        $region39: #{tpu_custom_call.1} parent=35 // pred_region
          %234 = dma.done %s227, 128
        $region40: #{tpu_custom_call.1} parent=35 // pred_fallthru
          _
        %s235 = sand.u32 %s66, 1
        %s236 = scalar_lea.sflag [#allocation8], %s235
        %s237 = sand.u32 %s66, 1
        %s238 = smul.addr %s237, 8
        %s239 = scalar_lea.vmem [#allocation7], %s238
        // Predicated region
        $region41: #{tpu_custom_call.1} parent=35 // pred_check
          %p240 = pneg %p79
        $region42: #{tpu_custom_call.1} parent=35 // pred_check_branch
          %242 = sbr.rel (%p240) target = $region44
        $region43: #{tpu_custom_call.1} parent=35 // pred_region
          %243 = dma.done %s236, 128
        $region44: #{tpu_custom_call.1} parent=35 // pred_fallthru
          _
        // Predicated region
        $region45: #{tpu_custom_call.1} parent=35 // pred_check
          %p244 = pneg %p100
        $region46: #{tpu_custom_call.1} parent=35 // pred_check_branch
          %246 = sbr.rel (%p244) target = $region48
        $region47: #{tpu_custom_call.1} parent=35 // pred_region
          %247 = dma.done [#allocation6], 16
        $region48: #{tpu_custom_call.1} parent=35 // pred_fallthru
          _
        %248 = sfence
        %s249 = sand.u32 %s34, 1
        %s250 = scalar_lea.sflag [#allocation4], %s249
        %s251 = sand.u32 %s34, 1
        %s252 = smul.addr %s251, 8
        %s253 = scalar_lea.vmem [#allocation3], %s252
        %p254 = pneg %p47
        %p255 = pneg %p44
        %s256 = sand.u32 %s66, 1
        %s257 = scalar_lea.sflag [#allocation8], %s256
        %s258 = sand.u32 %s66, 1
        %s259 = smul.addr %s258, 8
        %s260 = scalar_lea.vmem [#allocation7], %s259
        %p261 = pneg %p79
        %p262 = pneg %p76
        %p263 = pneg %p100
        %p264 = pneg %p97
        %p265 = pneg %p121
        %p266 = pneg %p118
        %p267 = pneg %p147
        %p268 = pneg %p144
        %s269 = sand.u32 %s134, 1
        %s270 = scalar_lea.sflag [#allocation5], %s269
        %s271 = sand.u32 %s134, 1
        %s272 = smul.addr %s271, 8
        %s273 = scalar_lea.vmem [#allocation10], %s272
        %s274 = sadd.s32 %s26, 1
        %p275 = scmp.lt.s32.totalorder %s274, 1
        %s276 = scalar_select %p275, %s274, 1
        %s277 = sld [smem:[#allocation9]]
        %s278 = sld [smem:[#allocation9 + $0x1]]
        %s279 = sld [smem:[#allocation9 + $0x2]]
        %s280 = sld [smem:[#allocation9 + $0x3]]
        %s281 = sld [smem:[#allocation9 + $0x4]]
        %s282 = sld [smem:[#allocation9 + $0x5]]
        %s283 = sld [smem:[#allocation9 + $0x6]]
        %s284 = sld [smem:[#allocation9 + $0x7]]
        %s285 = sld [smem:[#allocation9 + $0x8]]
        %s286 = sld [smem:[#allocation2]]
        %v287 = vld [vmem:[%s230] sm:$0xff]
        %v288 = vld [vmem:[%s239] sm:$0xff]
        %v289 = vstv %s286
        %v290 = vstv %s277
        %v291 = vmul.f32 %v287, %v290
        %v292 = vadd.f32 %v289, %v291
        %v293 = vstv %s280
        %v294 = vmul.f32 %v287, %v293
        %v295 = vmul.f32 %v288, %v293
        %vm298 = vcmask 1046528
        %v299 = vrot.slane %v294, 1
        %v300 = vrot.slane %v295, 1
        %v301 = vsel %vm298, %v299, %v300
        %v303 = vadd.f32 %v292, %v301
        %v304 = vstv %s283
        %v305 = vmul.f32 %v287, %v304
        %v306 = vmul.f32 %v288, %v304
        %vm309 = vcmask 1045504
        %v310 = vrot.slane %v305, 2
        %v311 = vrot.slane %v306, 2
        %v312 = vsel %vm309, %v310, %v311
        %v314 = vadd.f32 %v303, %v312
        %v315 = vstv %s278
        %v316 = vmul.f32 %v287, %v315
        %318 = vrot.lane.b32.xlu0 %v316, 127
        %v319 = vpop.permute.xlu0 %318
        %v321 = vadd.f32 %v314, %v319
        %v322 = vstv %s281
        %v323 = vmul.f32 %v287, %v322
        %v324 = vmul.f32 %v288, %v322
        %v327 = vrot.slane %v323, 1
        %v328 = vrot.slane %v324, 1
        %v329 = vsel %vm298, %v327, %v328
        %330 = vrot.lane.b32.xlu0 %v329, 127
        %v331 = vpop.permute.xlu0 %330
        %v333 = vadd.f32 %v321, %v331
        %v334 = vstv %s284
        %v335 = vmul.f32 %v287, %v334
        %v336 = vmul.f32 %v288, %v334
        %v339 = vrot.slane %v335, 2
        %v340 = vrot.slane %v336, 2
        %v341 = vsel %vm309, %v339, %v340
        %342 = vrot.lane.b32.xlu0 %v341, 127
        %v343 = vpop.permute.xlu0 %342
        %v345 = vadd.f32 %v333, %v343
        %v346 = vstv %s279
        %v347 = vmul.f32 %v287, %v346
        %349 = vrot.lane.b32.xlu0 %v347, 126
        %v350 = vpop.permute.xlu0 %349
        %v352 = vadd.f32 %v345, %v350
        %v353 = vstv %s282
        %v354 = vmul.f32 %v287, %v353
        %v355 = vmul.f32 %v288, %v353
        %v358 = vrot.slane %v354, 1
        %v359 = vrot.slane %v355, 1
        %v360 = vsel %vm298, %v358, %v359
        %361 = vrot.lane.b32.xlu0 %v360, 126
        %v362 = vpop.permute.xlu0 %361
        %v364 = vadd.f32 %v352, %v362
        %v365 = vstv %s285
        %v366 = vmul.f32 %v287, %v365
        %v367 = vmul.f32 %v288, %v365
        %v370 = vrot.slane %v366, 2
        %v371 = vrot.slane %v367, 2
        %v372 = vsel %vm309, %v370, %v371
        %373 = vrot.lane.b32.xlu0 %v372, 126
        %v374 = vpop.permute.xlu0 %373
        %v376 = vadd.f32 %v364, %v374
        %vm377 = vcmask 113664
        %378 = vst.msk [vmem:[%s273] sm:$0xff] %vm377, %v376
        %s379 = sand.u32 %s134, 1
        %s380 = scalar_lea.sflag [#allocation5], %s379
        %s381 = sand.u32 %s134, 1
        %s382 = smul.addr %s381, 8
        %s383 = scalar_lea.vmem [#allocation10], %s382
        // Predicated region
        $region49: #{tpu_custom_call.1} parent=35 // pred_check
          %p384 = pneg %p144
        $region50: #{tpu_custom_call.1} parent=35 // pred_check_branch
          %386 = sbr.rel (%p384) target = $region52
        $region51: #{tpu_custom_call.1} parent=35 // pred_region
          %s388 = ssub.s32 128, 128
          %389 = vsyncadd %s380, %s388
          %s390 = smul.addr %s26, 128
          %s391 = scalar_lea.hbm %s4, %s390
          %s393 = sshll.u32 %s383, 4
          %s394 = int_to_ptr.vmem [resolvable:$true] %s393
          %396 = dma.vmem_to_hbm [thread:$0]  %s394, 128, %s391, %s380
        $region52: #{tpu_custom_call.1} parent=35 // pred_fallthru
          _
      $region36: #{tpu_custom_call.1} parent=5 // pred_fallthru
        _
      %p397 = scmp.le.s32.totalorder 2, %s21
      // Predicated region
      $region53: #{tpu_custom_call.1} parent=5 // pred_check
        %p398 = pneg %p397
      $region54: #{tpu_custom_call.1} parent=5 // pred_check_branch
        %400 = sbr.rel (%p398) target = $region56
      $region55: #{tpu_custom_call.1} parent=5 // pred_region
        %s401 = ssub.s32 %s21, 2
        // Predicated region
        $region57: #{tpu_custom_call.1} parent=55 // pred_check
          %p402 = pneg %p150
        $region58: #{tpu_custom_call.1} parent=55 // pred_check_branch
          %404 = sbr.rel (%p402) target = $region60
        $region59: #{tpu_custom_call.1} parent=55 // pred_region
          %s405 = sand.u32 %s135, 1
          %s406 = scalar_lea.sflag [#allocation5], %s405
          %s407 = sand.u32 %s135, 1
          %s408 = smul.addr %s407, 8
          %s409 = scalar_lea.vmem [#allocation10], %s408
          %410 = dma.done %s406, 128
        $region60: #{tpu_custom_call.1} parent=55 // pred_fallthru
          _
      $region56: #{tpu_custom_call.1} parent=5 // pred_fallthru
        _
    $region6: #{tpu_custom_call.1} parent=1 // loop_footer
      %s25 = sadd.s32 1, %s21
    $region7: #{tpu_custom_call.1} parent=1 // loop_footer_branch
      %20 = sbr.rel target = $region3
    $region8: #{tpu_custom_call.1} parent=1 // loop_exit
      _
    %411 = vsyncpa [#allocation4], 1
    %s412 = scalar_lea.sflag [#allocation4], 1
    %413 = vsyncpa %s412, 1
    %414 = vsyncpa [#allocation8], 1
    %s415 = scalar_lea.sflag [#allocation8], 1
    %416 = vsyncpa %s415, 1
    %417 = vsyncpa [#allocation5], 1
    %s418 = scalar_lea.sflag [#allocation5], 1
    %419 = vsyncpa %s418, 1
    %420 = vsyncpa [#allocation6], 1
    %s421 = scalar_lea.sflag [#allocation6], 1
    %422 = vsyncpa %s421, 1

</llo_original>
